<compile_context>
chip_gen: v7x
topology: tpu7x:2x2x1
jax: 0.10.0
libtpu: 0.0.40
codegen_flags: <defaults>
</compile_context>

<pallas_src>
import jax
import jax.numpy as jnp
from jax.experimental import pallas as pl
from jax.experimental.pallas import tpu as pltpu  # noqa: F401  (TPU backend module)

# ---------------- configuration (small, deterministic) ----------------
NUM_MODELS = 2           # len(models)
BAYES_ITERS = 10         # hard-coded in GraphNetworkEnsemble.forward
SAMPLES = NUM_MODELS * BAYES_ITERS

B = 2       # graphs in the batch
N = 16      # atoms (nodes)
E = 32      # bonds (directed edges)
FA = 8      # atom feature dim
FB = 8      # bond feature dim
FIN = FA + FB
H = 32      # hidden size of each sub-model
O = 4       # output dim (== len(prediction_names))

S_ROWS = BAYES_ITERS * B        # all bayes samples stacked along rows (per model)
MH = NUM_MODELS * H             # fused (block-diagonal) hidden width
MO = NUM_MODELS * O             # fused output width

P_DROP = 0.25                       # MC-dropout prob
KEEP_SCALE = 1.0 / (1.0 - P_DROP)   # train-mode dropout rescale


# ------------------------------ kernel --------------------------------
def ensemble_kernel(f_atoms_ref, msg_in_ref, agg_ref, rep_scope_ref,
                    rep_ref, red_ref, colsum_ref, colexp_ref,
                    w_msg_ref, b_msg_ref, w_node_ref, w_self_ref, b_node_ref,
                    w_out_ref, b_out_ref, mask_ref,
                    logits_ref, std_ref):
    dot = lambda a, b: jnp.dot(a, b, preferred_element_type=jnp.float32)

    # ---- fused (block-diagonal over the NUM_MODELS sub-models) forward pass.
    #      This dropout-invariant part runs ONCE, not once per MC sample. ----
    msg = jnp.maximum(dot(msg_in_ref[...], w_msg_ref[...]) + b_msg_ref[...], 0.0)   # [E, M*H]
    agg = dot(agg_ref[...], msg)                              # [N, M*H]  scatter-add as matmul
    h = jnp.maximum(dot(agg, w_node_ref[...])
                    + dot(f_atoms_ref[...], w_self_ref[...])
                    + b_node_ref[...], 0.0)                   # [N, M*H]
    g_rep = dot(rep_scope_ref[...], h)                        # [BAYES*B, M*H]  readout,
                                                              # replicated per bayes iteration

    # ---- MC dropout (pre-scaled keep mask) + ONE batched output matmul for
    #      all NUM_MODELS*BAYES_ITERS samples at once ----
    gd = g_rep * mask_ref[...]                                # [BAYES*B, M*H]
    out = dot(gd, w_out_ref[...]) + b_out_ref[...]            # [BAYES*B, M*O]

    # ---- ensemble mean / unbiased std over the SAMPLES axis.
    #      Sample-axis broadcast and reduction are expressed as tiny matmuls:
    #        red  [B, BAYES*B]   sums over bayes iterations (per batch row)
    #        colsum [M*O, O]     sums over the model lane-blocks
    #        rep  [BAYES*B, B],  colexp [O, M*O]   broadcast mean back ----
    red = red_ref[...]
    colsum = colsum_ref[...]
    sum_bo = dot(dot(red, out), colsum)                       # [B, O]
    mean = sum_bo * (1.0 / SAMPLES)
    mean_full = dot(dot(rep_ref[...], mean), colexp_ref[...]) # [BAYES*B, M*O]
    d = out - mean_full
    ssq = dot(dot(red, d * d), colsum)                        # [B, O]

    logits_ref[...] = mean
    std_ref[...] = jnp.sqrt(ssq * (1.0 / (SAMPLES - 1)))      # ddof=1 (torch.std default)


# --------------------------- host-side glue ---------------------------
def block_diag(mats):
    rows = []
    for i, m in enumerate(mats):
        row = [m if j == i else jnp.zeros((m.shape[0], mats[j].shape[1]), m.dtype)
               for j in range(len(mats))]
        rows.append(jnp.concatenate(row, axis=1))
    return jnp.concatenate(rows, axis=0)


def fuse_params(params):
    """Fuse the per-model weight stacks into block-diagonal / lane-concatenated
    weights so one forward pass computes every sub-model (lane-dense)."""
    cat1 = lambda w: jnp.concatenate([w[m] for m in range(NUM_MODELS)], axis=1)
    return {
        "w_msg": cat1(params["w_msg"]),                                       # [FIN, M*H]
        "b_msg": cat1(params["b_msg"]),                                       # [1,   M*H]
        "w_node": block_diag([params["w_node"][m] for m in range(NUM_MODELS)]),  # [M*H, M*H]
        "w_self": cat1(params["w_self"]),                                     # [FA,  M*H]
        "b_node": cat1(params["b_node"]),                                     # [1,   M*H]
        "w_out": block_diag([params["w_out"][m] for m in range(NUM_MODELS)]),    # [M*H, M*O]
        "b_out": cat1(params["b_out"]),                                       # [1,   M*O]
    }


def graph_ensemble_forward(f_atoms, f_bonds, bond_src, bond_dst, params, mask_f):
    f32 = jnp.float32
    # glue: edge gather/concat + dense incidence / readout matrices (index -> one-hot)
    msg_in = jnp.concatenate([f_atoms[bond_src], f_bonds], axis=-1)                  # [E, FIN]
    agg_mat = (bond_dst[None, :] == jnp.arange(N)[:, None]).astype(f32)              # [N, E]
    atoms_per_graph = N // B
    scope = (jnp.arange(N)[None, :] // atoms_per_graph
             == jnp.arange(B)[:, None]).astype(f32)                                  # [B, N]

    # sample-replication / reduction helper matrices (so broadcast/reduce over
    # the MC-sample axis are single MXU matmuls inside the kernel)
    rep_mat = (jnp.arange(S_ROWS)[:, None] % B == jnp.arange(B)[None, :]).astype(f32)  # [S_ROWS, B]
    red_mat = rep_mat.T                                                                # [B, S_ROWS]
    rep_scope = rep_mat @ scope                                                        # [S_ROWS, N]
    colsum = jnp.tile(jnp.eye(O, dtype=f32), (NUM_MODELS, 1))                          # [M*O, O]
    colexp = jnp.tile(jnp.eye(O, dtype=f32), (1, NUM_MODELS))                          # [O, M*O]

    fused = fuse_params(params)

    # Single program, no grid: every operand (<100 KB total) lives in VMEM once
    # as a whole-array block — no per-step pipeline / revisit overhead.
    logits, std = pl.pallas_call(
        ensemble_kernel,
        out_shape=(jax.ShapeDtypeStruct((B, O), f32),
                   jax.ShapeDtypeStruct((B, O), f32)),
    )(f_atoms, msg_in, agg_mat, rep_scope, rep_mat, red_mat, colsum, colexp,
      fused["w_msg"], fused["b_msg"], fused["w_node"], fused["w_self"],
      fused["b_node"], fused["w_out"], fused["b_out"], mask_f)
    return logits, std


# ------------------------ pure-JAX reference --------------------------
def reference_forward(f_atoms, f_bonds, bond_src, bond_dst, params, mask_f):
    """Per-model / per-sample reference with the exact PyTorch ensemble semantics
    (stack over NUM_MODELS*10 MC-dropout forwards, mean & unbiased std over dim 0)."""
    f32 = jnp.float32
    msg_in = jnp.concatenate([f_atoms[bond_src], f_bonds], axis=-1)
    agg_mat = (bond_dst[None, :] == jnp.arange(N)[:, None]).astype(f32)
    atoms_per_graph = N // B
    scope = (jnp.arange(N)[None, :] // atoms_per_graph
             == jnp.arange(B)[:, None]).astype(f32)
    outs = []
    for m in range(NUM_MODELS):
        msg = jax.nn.relu(msg_in @ params["w_msg"][m] + params["b_msg"][m])
        h = jax.nn.relu(agg_mat @ msg @ params["w_node"][m]
                        + f_atoms @ params["w_self"][m] + params["b_node"][m])
        g = scope @ h                                               # [B, H]
        for t in range(BAYES_ITERS):
            mask_mt = mask_f[t * B:(t + 1) * B, m * H:(m + 1) * H]  # [B, H]
            outs.append((g * mask_mt) @ params["w_out"][m] + params["b_out"][m])
    outs = jnp.stack(outs, axis=0)                                  # [SAMPLES, B, O]
    return outs.mean(axis=0), outs.std(axis=0, ddof=1)


def init_params(key):
    ks = jax.random.split(key, 7)
    scale = 0.1
    return {
        "w_msg":  scale * jax.random.normal(ks[0], (NUM_MODELS, FIN, H), jnp.float32),
        "b_msg":  scale * jax.random.normal(ks[1], (NUM_MODELS, 1, H), jnp.float32),
        "w_node": scale * jax.random.normal(ks[2], (NUM_MODELS, H, H), jnp.float32),
        "w_self": scale * jax.random.normal(ks[3], (NUM_MODELS, FA, H), jnp.float32),
        "b_node": scale * jax.random.normal(ks[4], (NUM_MODELS, 1, H), jnp.float32),
        "w_out":  scale * jax.random.normal(ks[5], (NUM_MODELS, H, O), jnp.float32),
        "b_out":  scale * jax.random.normal(ks[6], (NUM_MODELS, 1, O), jnp.float32),
    }


if __name__ == "__main__":
    key = jax.random.PRNGKey(0)
    k_atom, k_bond, k_src, k_dst, k_par, k_mask = jax.random.split(key, 6)

    # x = (atom_features, bond_features, bond_src, bond_dst)
    f_atoms = jax.random.normal(k_atom, (N, FA), jnp.float32)
    f_bonds = jax.random.normal(k_bond, (E, FB), jnp.float32)
    bond_src = jax.random.randint(k_src, (E,), 0, N, dtype=jnp.int32)
    bond_dst = jax.random.randint(k_dst, (E,), 0, N, dtype=jnp.int32)

    params = init_params(k_par)

    # One pre-scaled MC-dropout keep mask covering every (model, bayes_iter, batch)
    # sample: rows = bayes_iter*B + batch, lane blocks = model.  Drawn host-side
    # (deterministic) — pltpu hardware PRNG has no CPU/interpret lowering.
    keep = jax.random.bernoulli(k_mask, 1.0 - P_DROP, (S_ROWS, MH))
    mask_f = keep.astype(jnp.float32) * KEEP_SCALE

    logits, std = graph_ensemble_forward(f_atoms, f_bonds, bond_src, bond_dst,
                                         params, mask_f)
    jax.block_until_ready((logits, std))

    ref_logits, ref_std = reference_forward(f_atoms, f_bonds, bond_src, bond_dst,
                                            params, mask_f)

    assert logits.shape == (B, O) and std.shape == (B, O)
    assert bool(jnp.all(jnp.isfinite(logits))) and bool(jnp.all(jnp.isfinite(std)))
    assert bool(jnp.all(std >= 0.0))
    assert bool(jnp.allclose(logits, ref_logits, atol=1e-2, rtol=1e-2))
    assert bool(jnp.allclose(std, ref_std, atol=1e-2, rtol=1e-2))
    print("KERNEL_OK")
</pallas_src>

<mosaic_0001>
module attributes {stable_mosaic.version = 11 : i64} {
  func.func @ensemble_kernel(%arg0: memref<16x8xf32, #tpu.memory_space<vmem>>, %arg1: memref<32x16xf32, #tpu.memory_space<vmem>>, %arg2: memref<16x32xf32, #tpu.memory_space<vmem>>, %arg3: memref<20x16xf32, #tpu.memory_space<vmem>>, %arg4: memref<20x2xf32, #tpu.memory_space<vmem>>, %arg5: memref<2x20xf32, #tpu.memory_space<vmem>>, %arg6: memref<8x4xf32, #tpu.memory_space<vmem>>, %arg7: memref<4x8xf32, #tpu.memory_space<vmem>>, %arg8: memref<16x64xf32, #tpu.memory_space<vmem>>, %arg9: memref<1x64xf32, #tpu.memory_space<vmem>>, %arg10: memref<64x64xf32, #tpu.memory_space<vmem>>, %arg11: memref<8x64xf32, #tpu.memory_space<vmem>>, %arg12: memref<1x64xf32, #tpu.memory_space<vmem>>, %arg13: memref<64x8xf32, #tpu.memory_space<vmem>>, %arg14: memref<1x8xf32, #tpu.memory_space<vmem>>, %arg15: memref<20x64xf32, #tpu.memory_space<vmem>>, %arg16: memref<2x4xf32, #tpu.memory_space<vmem>>, %arg17: memref<2x4xf32, #tpu.memory_space<vmem>>) attributes {dimension_semantics = [], scalar_prefetch = 0 : i64, scratch_operands = 0 : i64, tpu.core_type = #tpu.core_type<tc>} {
    %c0 = arith.constant 0 : index
    %c0_0 = arith.constant 0 : index
    %0 = vector.load %arg1[%c0, %c0_0] : memref<32x16xf32, #tpu.memory_space<vmem>>, vector<32x16xf32>
    %c0_1 = arith.constant 0 : index
    %c0_2 = arith.constant 0 : index
    %1 = vector.load %arg8[%c0_1, %c0_2] : memref<16x64xf32, #tpu.memory_space<vmem>>, vector<16x64xf32>
    %cst = arith.constant dense<0.000000e+00> : vector<32x64xf32>
    %2 = tpu.matmul %0, %1, %cst {dimension_numbers = #tpu.dot_dimension_numbers<[1], [0], [0], [1], [0, 0, 1, 1], [], []>} : vector<32x16xf32>, vector<16x64xf32>, vector<32x64xf32> -> vector<32x64xf32>
    %c0_3 = arith.constant 0 : index
    %c0_4 = arith.constant 0 : index
    %3 = vector.load %arg9[%c0_3, %c0_4] : memref<1x64xf32, #tpu.memory_space<vmem>>, vector<1x64xf32>
    %4 = vector.broadcast %3 : vector<1x64xf32> to vector<32x64xf32>
    %5 = arith.addf %2, %4 : vector<32x64xf32>
    %cst_5 = arith.constant 0.000000e+00 : f32
    %6 = vector.broadcast %cst_5 : f32 to vector<32x64xf32>
    %7 = arith.maximumf %5, %6 : vector<32x64xf32>
    %c0_6 = arith.constant 0 : index
    %c0_7 = arith.constant 0 : index
    %8 = vector.load %arg2[%c0_6, %c0_7] : memref<16x32xf32, #tpu.memory_space<vmem>>, vector<16x32xf32>
    %cst_8 = arith.constant dense<0.000000e+00> : vector<16x64xf32>
    %9 = tpu.matmul %8, %7, %cst_8 {dimension_numbers = #tpu.dot_dimension_numbers<[1], [0], [0], [1], [0, 0, 1, 1], [], []>} : vector<16x32xf32>, vector<32x64xf32>, vector<16x64xf32> -> vector<16x64xf32>
    %c0_9 = arith.constant 0 : index
    %c0_10 = arith.constant 0 : index
    %10 = vector.load %arg10[%c0_9, %c0_10] : memref<64x64xf32, #tpu.memory_space<vmem>>, vector<64x64xf32>
    %cst_11 = arith.constant dense<0.000000e+00> : vector<16x64xf32>
    %11 = tpu.matmul %9, %10, %cst_11 {dimension_numbers = #tpu.dot_dimension_numbers<[1], [0], [0], [1], [0, 0, 1, 1], [], []>} : vector<16x64xf32>, vector<64x64xf32>, vector<16x64xf32> -> vector<16x64xf32>
    %c0_12 = arith.constant 0 : index
    %c0_13 = arith.constant 0 : index
    %12 = vector.load %arg0[%c0_12, %c0_13] : memref<16x8xf32, #tpu.memory_space<vmem>>, vector<16x8xf32>
    %c0_14 = arith.constant 0 : index
    %c0_15 = arith.constant 0 : index
    %13 = vector.load %arg11[%c0_14, %c0_15] : memref<8x64xf32, #tpu.memory_space<vmem>>, vector<8x64xf32>
    %cst_16 = arith.constant dense<0.000000e+00> : vector<16x64xf32>
    %14 = tpu.matmul %12, %13, %cst_16 {dimension_numbers = #tpu.dot_dimension_numbers<[1], [0], [0], [1], [0, 0, 1, 1], [], []>} : vector<16x8xf32>, vector<8x64xf32>, vector<16x64xf32> -> vector<16x64xf32>
    %15 = arith.addf %11, %14 : vector<16x64xf32>
    %c0_17 = arith.constant 0 : index
    %c0_18 = arith.constant 0 : index
    %16 = vector.load %arg12[%c0_17, %c0_18] : memref<1x64xf32, #tpu.memory_space<vmem>>, vector<1x64xf32>
    %17 = vector.broadcast %16 : vector<1x64xf32> to vector<16x64xf32>
    %18 = arith.addf %15, %17 : vector<16x64xf32>
    %cst_19 = arith.constant 0.000000e+00 : f32
    %19 = vector.broadcast %cst_19 : f32 to vector<16x64xf32>
    %20 = arith.maximumf %18, %19 : vector<16x64xf32>
    %c0_20 = arith.constant 0 : index
    %c0_21 = arith.constant 0 : index
    %21 = vector.load %arg3[%c0_20, %c0_21] : memref<20x16xf32, #tpu.memory_space<vmem>>, vector<20x16xf32>
    %cst_22 = arith.constant dense<0.000000e+00> : vector<20x64xf32>
    %22 = tpu.matmul %21, %20, %cst_22 {dimension_numbers = #tpu.dot_dimension_numbers<[1], [0], [0], [1], [0, 0, 1, 1], [], []>} : vector<20x16xf32>, vector<16x64xf32>, vector<20x64xf32> -> vector<20x64xf32>
    %c0_23 = arith.constant 0 : index
    %c0_24 = arith.constant 0 : index
    %23 = vector.load %arg15[%c0_23, %c0_24] : memref<20x64xf32, #tpu.memory_space<vmem>>, vector<20x64xf32>
    %24 = arith.mulf %22, %23 : vector<20x64xf32>
    %c0_25 = arith.constant 0 : index
    %c0_26 = arith.constant 0 : index
    %25 = vector.load %arg13[%c0_25, %c0_26] : memref<64x8xf32, #tpu.memory_space<vmem>>, vector<64x8xf32>
    %cst_27 = arith.constant dense<0.000000e+00> : vector<20x8xf32>
    %26 = tpu.matmul %24, %25, %cst_27 {dimension_numbers = #tpu.dot_dimension_numbers<[1], [0], [0], [1], [0, 0, 1, 1], [], []>} : vector<20x64xf32>, vector<64x8xf32>, vector<20x8xf32> -> vector<20x8xf32>
    %c0_28 = arith.constant 0 : index
    %c0_29 = arith.constant 0 : index
    %27 = vector.load %arg14[%c0_28, %c0_29] : memref<1x8xf32, #tpu.memory_space<vmem>>, vector<1x8xf32>
    %28 = vector.broadcast %27 : vector<1x8xf32> to vector<20x8xf32>
    %29 = arith.addf %26, %28 : vector<20x8xf32>
    %c0_30 = arith.constant 0 : index
    %c0_31 = arith.constant 0 : index
    %30 = vector.load %arg5[%c0_30, %c0_31] : memref<2x20xf32, #tpu.memory_space<vmem>>, vector<2x20xf32>
    %c0_32 = arith.constant 0 : index
    %c0_33 = arith.constant 0 : index
    %31 = vector.load %arg6[%c0_32, %c0_33] : memref<8x4xf32, #tpu.memory_space<vmem>>, vector<8x4xf32>
    %cst_34 = arith.constant dense<0.000000e+00> : vector<2x8xf32>
    %32 = tpu.matmul %30, %29, %cst_34 {dimension_numbers = #tpu.dot_dimension_numbers<[1], [0], [0], [1], [0, 0, 1, 1], [], []>} : vector<2x20xf32>, vector<20x8xf32>, vector<2x8xf32> -> vector<2x8xf32>
    %cst_35 = arith.constant dense<0.000000e+00> : vector<2x4xf32>
    %33 = tpu.matmul %32, %31, %cst_35 {dimension_numbers = #tpu.dot_dimension_numbers<[1], [0], [0], [1], [0, 0, 1, 1], [], []>} : vector<2x8xf32>, vector<8x4xf32>, vector<2x4xf32> -> vector<2x4xf32>
    %cst_36 = arith.constant 5.000000e-02 : f32
    %34 = vector.broadcast %cst_36 : f32 to vector<2x4xf32>
    %35 = arith.mulf %33, %34 : vector<2x4xf32>
    %c0_37 = arith.constant 0 : index
    %c0_38 = arith.constant 0 : index
    %36 = vector.load %arg4[%c0_37, %c0_38] : memref<20x2xf32, #tpu.memory_space<vmem>>, vector<20x2xf32>
    %cst_39 = arith.constant dense<0.000000e+00> : vector<20x4xf32>
    %37 = tpu.matmul %36, %35, %cst_39 {dimension_numbers = #tpu.dot_dimension_numbers<[1], [0], [0], [1], [0, 0, 1, 1], [], []>} : vector<20x2xf32>, vector<2x4xf32>, vector<20x4xf32> -> vector<20x4xf32>
    %c0_40 = arith.constant 0 : index
    %c0_41 = arith.constant 0 : index
    %38 = vector.load %arg7[%c0_40, %c0_41] : memref<4x8xf32, #tpu.memory_space<vmem>>, vector<4x8xf32>
    %cst_42 = arith.constant dense<0.000000e+00> : vector<20x8xf32>
    %39 = tpu.matmul %37, %38, %cst_42 {dimension_numbers = #tpu.dot_dimension_numbers<[1], [0], [0], [1], [0, 0, 1, 1], [], []>} : vector<20x4xf32>, vector<4x8xf32>, vector<20x8xf32> -> vector<20x8xf32>
    %40 = arith.subf %29, %39 : vector<20x8xf32>
    %41 = arith.mulf %40, %40 : vector<20x8xf32>
    %cst_43 = arith.constant dense<0.000000e+00> : vector<2x8xf32>
    %42 = tpu.matmul %30, %41, %cst_43 {dimension_numbers = #tpu.dot_dimension_numbers<[1], [0], [0], [1], [0, 0, 1, 1], [], []>} : vector<2x20xf32>, vector<20x8xf32>, vector<2x8xf32> -> vector<2x8xf32>
    %cst_44 = arith.constant dense<0.000000e+00> : vector<2x4xf32>
    %43 = tpu.matmul %42, %31, %cst_44 {dimension_numbers = #tpu.dot_dimension_numbers<[1], [0], [0], [1], [0, 0, 1, 1], [], []>} : vector<2x8xf32>, vector<8x4xf32>, vector<2x4xf32> -> vector<2x4xf32>
    %c0_45 = arith.constant 0 : index
    %c0_46 = arith.constant 0 : index
    %44 = vector.load %arg16[%c0_45, %c0_46] : memref<2x4xf32, #tpu.memory_space<vmem>>, vector<2x4xf32>
    tpu.vector_store %arg16[%c0_45, %c0_46], %35 {strides = array<i32>} : memref<2x4xf32, #tpu.memory_space<vmem>>, vector<2x4xf32>,
    %cst_47 = arith.constant 0.0526315793 : f32
    %45 = vector.broadcast %cst_47 : f32 to vector<2x4xf32>
    %46 = arith.mulf %43, %45 : vector<2x4xf32>
    %47 = math.sqrt %46 : vector<2x4xf32>
    %c0_48 = arith.constant 0 : index
    %c0_49 = arith.constant 0 : index
    %48 = vector.load %arg17[%c0_48, %c0_49] : memref<2x4xf32, #tpu.memory_space<vmem>>, vector<2x4xf32>
    tpu.vector_store %arg17[%c0_48, %c0_49], %47 {strides = array<i32>} : memref<2x4xf32, #tpu.memory_space<vmem>>, vector<2x4xf32>,
    return
  }
}

</mosaic_0001>

<llo_original>
// kernel: tpu_custom_call.1
$region0: #{tpu_custom_call.1}
  #allocation0 [shape = 'u32[]', space=smem, size = 0x4, offset = 0x4, fixed_abs, tag = 'smem constant byte address 0x4 - core index']
  #allocation1 [shape = 'u32[144,128]{1,0:T(1,128)}', space=vmem, size = 0x12000, scoped, tag = 'internal scratch']
  %s0 = inlined_call_operand.vmem [shape: f32[16,8], index: 0, kind: input, shape index: {}]
  %s1 = inlined_call_operand.vmem [shape: f32[32,16], index: 1, kind: input, shape index: {}]
  %s2 = inlined_call_operand.vmem [shape: f32[16,32], index: 2, kind: input, shape index: {}]
  %s3 = inlined_call_operand.vmem [shape: f32[20,16], index: 3, kind: input, shape index: {}]
  %s4 = inlined_call_operand.vmem [shape: f32[20,2], index: 4, kind: input, shape index: {}]
  %s5 = inlined_call_operand.vmem [shape: f32[2,20], index: 5, kind: input, shape index: {}]
  %s6 = inlined_call_operand.vmem [shape: f32[8,4], index: 6, kind: input, shape index: {}]
  %s7 = inlined_call_operand.vmem [shape: f32[4,8], index: 7, kind: input, shape index: {}]
  %s8 = inlined_call_operand.vmem [shape: f32[16,64], index: 8, kind: input, shape index: {}]
  %s9 = inlined_call_operand.vmem [shape: f32[1,64], index: 9, kind: input, shape index: {}]
  %s10 = inlined_call_operand.vmem [shape: f32[64,64], index: 10, kind: input, shape index: {}]
  %s11 = inlined_call_operand.vmem [shape: f32[8,64], index: 11, kind: input, shape index: {}]
  %s12 = inlined_call_operand.vmem [shape: f32[1,64], index: 12, kind: input, shape index: {}]
  %s13 = inlined_call_operand.vmem [shape: f32[64,8], index: 13, kind: input, shape index: {}]
  %s14 = inlined_call_operand.vmem [shape: f32[1,8], index: 14, kind: input, shape index: {}]
  %s15 = inlined_call_operand.vmem [shape: f32[20,64], index: 15, kind: input, shape index: {}]
  %s16 = inlined_call_operand.hbm [shape: f32[2,4], index: 16, kind: output, shape index: {0}]
  %s17 = inlined_call_operand.hbm [shape: f32[2,4], index: 17, kind: output, shape index: {1}]
  %18 = xla_tuple %s16, %s17
  %s19 = sld [smem:[#allocation0]]
  $region82: #{tpu_custom_call.1} parent=0
    _
  %s21 = ssub.s32 1, %s19
  %s22 = scalar_select 0, %s21, %s19
  $region1: #{tpu_custom_call.1} parent=0
    #allocation2 [shape = 'u8[1024]{0}', space=vmem, size = 0x400, scoped, tag = 'output window, operand 0, single buffered']
    #allocation3 [shape = 's32[1]{0}', space=sflag, size = 0x4, scoped, tag = 'scoped memory for tpu_custom_call.1']
    #allocation4 [shape = 'u8[1024]{0}', space=vmem, size = 0x400, scoped, tag = 'output window, operand 1, single buffered']
    #allocation5 [shape = 's32[1]{0}', space=sflag, size = 0x4, scoped, tag = 'scoped memory for tpu_custom_call.1']
    %23 = vsyncpa [#allocation3], 0
    %24 = vsyncpa [#allocation5], 0
    // Predicated region
    $region2: #{tpu_custom_call.1} parent=1 // pred_check
      _
    $region3: #{tpu_custom_call.1} parent=1 // pred_check_branch
      %26 = sbr.rel (0) target = $region5
    $region4: #{tpu_custom_call.1} parent=1 // pred_region
      _
    $region5: #{tpu_custom_call.1} parent=1 // pred_fallthru
      _
    // Predicated region
    $region6: #{tpu_custom_call.1} parent=1 // pred_check
      _
    $region7: #{tpu_custom_call.1} parent=1 // pred_check_branch
      %28 = sbr.rel (0) target = $region9
    $region8: #{tpu_custom_call.1} parent=1 // pred_region
      _
    $region9: #{tpu_custom_call.1} parent=1 // pred_fallthru
      _
    // Predicated region
    $region10: #{tpu_custom_call.1} parent=1 // pred_check
      _
    $region11: #{tpu_custom_call.1} parent=1 // pred_check_branch
      %30 = sbr.rel (0) target = $region13
    $region12: #{tpu_custom_call.1} parent=1 // pred_region
      _
    $region13: #{tpu_custom_call.1} parent=1 // pred_fallthru
      _
    // Predicated region
    $region14: #{tpu_custom_call.1} parent=1 // pred_check
      _
    $region15: #{tpu_custom_call.1} parent=1 // pred_check_branch
      %32 = sbr.rel (0) target = $region17
    $region16: #{tpu_custom_call.1} parent=1 // pred_region
      _
    $region17: #{tpu_custom_call.1} parent=1 // pred_fallthru
      _
    // Predicated region
    $region18: #{tpu_custom_call.1} parent=1 // pred_check
      _
    $region19: #{tpu_custom_call.1} parent=1 // pred_check_branch
      %34 = sbr.rel (0) target = $region21
    $region20: #{tpu_custom_call.1} parent=1 // pred_region
      _
    $region21: #{tpu_custom_call.1} parent=1 // pred_fallthru
      _
    // Predicated region
    $region22: #{tpu_custom_call.1} parent=1 // pred_check
      _
    $region23: #{tpu_custom_call.1} parent=1 // pred_check_branch
      %36 = sbr.rel (0) target = $region25
    $region24: #{tpu_custom_call.1} parent=1 // pred_region
      _
    $region25: #{tpu_custom_call.1} parent=1 // pred_fallthru
      _
    // Predicated region
    $region26: #{tpu_custom_call.1} parent=1 // pred_check
      _
    $region27: #{tpu_custom_call.1} parent=1 // pred_check_branch
      %38 = sbr.rel (0) target = $region29
    $region28: #{tpu_custom_call.1} parent=1 // pred_region
      _
    $region29: #{tpu_custom_call.1} parent=1 // pred_fallthru
      _
    // Predicated region
    $region30: #{tpu_custom_call.1} parent=1 // pred_check
      _
    $region31: #{tpu_custom_call.1} parent=1 // pred_check_branch
      %40 = sbr.rel (0) target = $region33
    $region32: #{tpu_custom_call.1} parent=1 // pred_region
      _
    $region33: #{tpu_custom_call.1} parent=1 // pred_fallthru
      _
    // Predicated region
    $region34: #{tpu_custom_call.1} parent=1 // pred_check
      _
    $region35: #{tpu_custom_call.1} parent=1 // pred_check_branch
      %42 = sbr.rel (0) target = $region37
    $region36: #{tpu_custom_call.1} parent=1 // pred_region
      _
    $region37: #{tpu_custom_call.1} parent=1 // pred_fallthru
      _
    // Predicated region
    $region38: #{tpu_custom_call.1} parent=1 // pred_check
      _
    $region39: #{tpu_custom_call.1} parent=1 // pred_check_branch
      %44 = sbr.rel (0) target = $region41
    $region40: #{tpu_custom_call.1} parent=1 // pred_region
      _
    $region41: #{tpu_custom_call.1} parent=1 // pred_fallthru
      _
    // Predicated region
    $region42: #{tpu_custom_call.1} parent=1 // pred_check
      _
    $region43: #{tpu_custom_call.1} parent=1 // pred_check_branch
      %46 = sbr.rel (0) target = $region45
    $region44: #{tpu_custom_call.1} parent=1 // pred_region
      _
    $region45: #{tpu_custom_call.1} parent=1 // pred_fallthru
      _
    // Predicated region
    $region46: #{tpu_custom_call.1} parent=1 // pred_check
      _
    $region47: #{tpu_custom_call.1} parent=1 // pred_check_branch
      %48 = sbr.rel (0) target = $region49
    $region48: #{tpu_custom_call.1} parent=1 // pred_region
      _
    $region49: #{tpu_custom_call.1} parent=1 // pred_fallthru
      _
    // Predicated region
    $region50: #{tpu_custom_call.1} parent=1 // pred_check
      _
    $region51: #{tpu_custom_call.1} parent=1 // pred_check_branch
      %50 = sbr.rel (0) target = $region53
    $region52: #{tpu_custom_call.1} parent=1 // pred_region
      _
    $region53: #{tpu_custom_call.1} parent=1 // pred_fallthru
      _
    // Predicated region
    $region54: #{tpu_custom_call.1} parent=1 // pred_check
      _
    $region55: #{tpu_custom_call.1} parent=1 // pred_check_branch
      %52 = sbr.rel (0) target = $region57
    $region56: #{tpu_custom_call.1} parent=1 // pred_region
      _
    $region57: #{tpu_custom_call.1} parent=1 // pred_fallthru
      _
    // Predicated region
    $region58: #{tpu_custom_call.1} parent=1 // pred_check
      _
    $region59: #{tpu_custom_call.1} parent=1 // pred_check_branch
      %54 = sbr.rel (0) target = $region61
    $region60: #{tpu_custom_call.1} parent=1 // pred_region
      _
    $region61: #{tpu_custom_call.1} parent=1 // pred_fallthru
      _
    // Predicated region
    $region62: #{tpu_custom_call.1} parent=1 // pred_check
      _
    $region63: #{tpu_custom_call.1} parent=1 // pred_check_branch
      %56 = sbr.rel (0) target = $region65
    $region64: #{tpu_custom_call.1} parent=1 // pred_region
      _
    $region65: #{tpu_custom_call.1} parent=1 // pred_fallthru
      _
    %v57 = vld [vmem:[%s1] sm:$0xff]
    %v58 = vld [vmem:[%s1 + $0x8] sm:$0xff]
    %v59 = vld [vmem:[%s1 + $0x10] sm:$0xff]
    %v60 = vld [vmem:[%s1 + $0x18] sm:$0xff]
    %v61 = vld [vmem:[%s8] sm:$0xff]
    %v62 = vld [vmem:[%s8 + $0x8] sm:$0xff]
    %v63 = vld [vmem:[%s9] sm:$0x1]
    %v65 = vlaneseq
    %v66 = vshrl.u32 %v65, 7
    %v67 = vsub.s32 0, %v66
    %v68 = vrot.slane %v63, %v67
    %vm70 = vcmask 130048
    %v72 = vsel %vm70, %v57, 0
    %v75 = vsel %vm70, %v58, 0
    %v78 = vsel %vm70, %v59, 0
    %v81 = vsel %vm70, %v60, 0
    %83 = vmatprep.subr.mxu0 0.0
    %84 = vmatpush1.msra.mxu0 %v61
    %85 = vmatprep.subr.mxu0 0.0
    %86 = vmatpush1.msra.mxu0 %v62
    %87 = vmatprep.subr.mxu0 0.0
    %88 = vmatpush1.msra.mxu0 0.0
    %89 = vmatprep.subr.mxu0 0.0
    %90 = vmatpush1.msra.mxu0 0.0
    %91 = vmatprep.subr.mxu0 0.0
    %92 = vmatpush1.msra.mxu0 0.0
    %93 = vmatprep.subr.mxu0 0.0
    %94 = vmatpush1.msra.mxu0 0.0
    %95 = vmatprep.subr.mxu0 0.0
    %96 = vmatpush1.msra.mxu0 0.0
    %97 = vmatprep.subr.mxu0 0.0
    %98 = vmatpush1.msra.mxu0 0.0
    %99 = vmatprep.subr.mxu0 0.0
    %100 = vmatpush1.msra.mxu0 0.0
    %101 = vmatprep.subr.mxu0 0.0
    %102 = vmatpush1.msra.mxu0 0.0
    %103 = vmatprep.subr.mxu0 0.0
    %104 = vmatpush1.msra.mxu0 0.0
    %105 = vmatprep.subr.mxu0 0.0
    %106 = vmatpush1.msra.mxu0 0.0
    %107 = vmatprep.subr.mxu0 0.0
    %108 = vmatpush1.msra.mxu0 0.0
    %109 = vmatprep.subr.mxu0 0.0
    %110 = vmatpush1.msra.mxu0 0.0
    %111 = vmatprep.subr.mxu0 0.0
    %112 = vmatpush1.msra.mxu0 0.0
    %113 = vmatprep.subr.mxu0 0.0
    %114 = vmatpush1.msra.mxu0 0.0
    %115 = vmatprep.subr.mxu0 0.0
    %116 = vmatpush1.msra.mxu0 0.0
    %117 = vmatprep.subr.mxu0 0.0
    %118 = vmatpush1.msra.mxu0 0.0
    %119 = vmatprep.subr.mxu0 0.0
    %120 = vmatpush1.msra.mxu0 0.0
    %121 = vmatprep.subr.mxu0 0.0
    %122 = vmatpush1.msra.mxu0 0.0
    %123 = vmatprep.subr.mxu0 0.0
    %124 = vmatpush1.msra.mxu0 0.0
    %125 = vmatprep.subr.mxu0 0.0
    %126 = vmatpush1.msra.mxu0 0.0
    %127 = vmatprep.subr.mxu0 0.0
    %128 = vmatpush1.msra.mxu0 0.0
    %129 = vmatprep.subr.mxu0 0.0
    %130 = vmatpush1.msra.mxu0 0.0
    %131 = vmatprep.subr.mxu0 0.0
    %132 = vmatpush1.msra.mxu0 0.0
    %133 = vmatprep.subr.mxu0 0.0
    %134 = vmatpush1.msra.mxu0 0.0
    %135 = vmatprep.subr.mxu0 0.0
    %136 = vmatpush1.msra.mxu0 0.0
    %137 = vmatprep.subr.mxu0 0.0
    %138 = vmatpush1.msra.mxu0 0.0
    %139 = vmatprep.subr.mxu0 0.0
    %140 = vmatpush1.msra.mxu0 0.0
    %141 = vmatprep.subr.mxu0 0.0
    %142 = vmatpush1.msra.mxu0 0.0
    %143 = vmatprep.subr.mxu0 0.0
    %144 = vmatpush1.msra.mxu0 0.0
    %145 = vmatprep.subr.mxu0 0.0
    %146 = vmatpush1.msra.mxu0 0.0
    %147 = vmatprep.mubr.f32.mxu0 0.0
    %148 = vmatmul.mubr.f32.gmra.mrb[0].mxu0 %v72
    %v149 = vpop.f32.mrb[0].mxu0
    %v150 = vadd.f32 %v68, %v149
    %v151 = vpop.f32.mrb[0].mxu0
    %152 = vmatprep.mubr.f32.mxu0 0.0
    %153 = vmatmul.mubr.f32.gmra.mrb[0].mxu0 %v75
    %v154 = vpop.f32.mrb[0].mxu0
    %v155 = vadd.f32 %v68, %v154
    %v156 = vpop.f32.mrb[0].mxu0
    %157 = vmatprep.mubr.f32.mxu0 0.0
    %158 = vmatmul.mubr.f32.gmra.mrb[0].mxu0 %v78
    %v159 = vpop.f32.mrb[0].mxu0
    %v160 = vadd.f32 %v68, %v159
    %v161 = vpop.f32.mrb[0].mxu0
    %162 = vmatprep.mubr.f32.mxu0 0.0
    %163 = vmatmul.mubr.f32.gmra.mrb[0].mxu0 %v81
    %v164 = vpop.f32.mrb[0].mxu0
    %v165 = vadd.f32 %v68, %v164
    %v166 = vpop.f32.mrb[0].mxu0
    %167 = vdwg.mxu0
    %v168 = vmax.f32 %v150, 0.0
    %v169 = vmax.f32 %v155, 0.0
    %v170 = vmax.f32 %v160, 0.0
    %v171 = vmax.f32 %v165, 0.0
    %v172 = vld [vmem:[%s2] sm:$0xff]
    %v173 = vld [vmem:[%s2 + $0x8] sm:$0xff]
    %vm174 = vcmask 261120
    %v176 = vsel %vm174, %v172, 0
    %v179 = vsel %vm174, %v173, 0
    %181 = vmatprep.subr.mxu0 0.0
    %182 = vmatpush1.msra.mxu0 %v168
    %183 = vmatprep.subr.mxu0 0.0
    %184 = vmatpush1.msra.mxu0 %v169
    %185 = vmatprep.subr.mxu0 0.0
    %186 = vmatpush1.msra.mxu0 %v170
    %187 = vmatprep.subr.mxu0 0.0
    %188 = vmatpush1.msra.mxu0 %v171
    %189 = vmatprep.subr.mxu0 0.0
    %190 = vmatpush1.msra.mxu0 0.0
    %191 = vmatprep.subr.mxu0 0.0
    %192 = vmatpush1.msra.mxu0 0.0
    %193 = vmatprep.subr.mxu0 0.0
    %194 = vmatpush1.msra.mxu0 0.0
    %195 = vmatprep.subr.mxu0 0.0
    %196 = vmatpush1.msra.mxu0 0.0
    %197 = vmatprep.subr.mxu0 0.0
    %198 = vmatpush1.msra.mxu0 0.0
    %199 = vmatprep.subr.mxu0 0.0
    %200 = vmatpush1.msra.mxu0 0.0
    %201 = vmatprep.subr.mxu0 0.0
    %202 = vmatpush1.msra.mxu0 0.0
    %203 = vmatprep.subr.mxu0 0.0
    %204 = vmatpush1.msra.mxu0 0.0
    %205 = vmatprep.subr.mxu0 0.0
    %206 = vmatpush1.msra.mxu0 0.0
    %207 = vmatprep.subr.mxu0 0.0
    %208 = vmatpush1.msra.mxu0 0.0
    %209 = vmatprep.subr.mxu0 0.0
    %210 = vmatpush1.msra.mxu0 0.0
    %211 = vmatprep.subr.mxu0 0.0
    %212 = vmatpush1.msra.mxu0 0.0
    %213 = vmatprep.subr.mxu0 0.0
    %214 = vmatpush1.msra.mxu0 0.0
    %215 = vmatprep.subr.mxu0 0.0
    %216 = vmatpush1.msra.mxu0 0.0
    %217 = vmatprep.subr.mxu0 0.0
    %218 = vmatpush1.msra.mxu0 0.0
    %219 = vmatprep.subr.mxu0 0.0
    %220 = vmatpush1.msra.mxu0 0.0
    %221 = vmatprep.subr.mxu0 0.0
    %222 = vmatpush1.msra.mxu0 0.0
    %223 = vmatprep.subr.mxu0 0.0
    %224 = vmatpush1.msra.mxu0 0.0
    %225 = vmatprep.subr.mxu0 0.0
    %226 = vmatpush1.msra.mxu0 0.0
    %227 = vmatprep.subr.mxu0 0.0
    %228 = vmatpush1.msra.mxu0 0.0
    %229 = vmatprep.subr.mxu0 0.0
    %230 = vmatpush1.msra.mxu0 0.0
    %231 = vmatprep.subr.mxu0 0.0
    %232 = vmatpush1.msra.mxu0 0.0
    %233 = vmatprep.subr.mxu0 0.0
    %234 = vmatpush1.msra.mxu0 0.0
    %235 = vmatprep.subr.mxu0 0.0
    %236 = vmatpush1.msra.mxu0 0.0
    %237 = vmatprep.subr.mxu0 0.0
    %238 = vmatpush1.msra.mxu0 0.0
    %239 = vmatprep.subr.mxu0 0.0
    %240 = vmatpush1.msra.mxu0 0.0
    %241 = vmatprep.subr.mxu0 0.0
    %242 = vmatpush1.msra.mxu0 0.0
    %243 = vmatprep.subr.mxu0 0.0
    %244 = vmatpush1.msra.mxu0 0.0
    %245 = vmatprep.mubr.f32.mxu0 0.0
    %246 = vmatmul.mubr.f32.gmra.mrb[0].mxu0 %v176
    %v247 = vpop.f32.mrb[0].mxu0
    %v248 = vadd.f32 0.0, %v247
    %v249 = vpop.f32.mrb[0].mxu0
    %250 = vmatprep.mubr.f32.mxu0 0.0
    %251 = vmatmul.mubr.f32.gmra.mrb[0].mxu0 %v179
    %v252 = vpop.f32.mrb[0].mxu0
    %v253 = vadd.f32 0.0, %v252
    %v254 = vpop.f32.mrb[0].mxu0
    %255 = vdwg.mxu0
    %v256 = vld [vmem:[%s10] sm:$0xff]
    %v257 = vld [vmem:[%s10 + $0x8] sm:$0xff]
    %v258 = vld [vmem:[%s10 + $0x10] sm:$0xff]
    %v259 = vld [vmem:[%s10 + $0x18] sm:$0xff]
    %v260 = vld [vmem:[%s10 + $0x20] sm:$0xff]
    %v261 = vld [vmem:[%s10 + $0x28] sm:$0xff]
    %v262 = vld [vmem:[%s10 + $0x30] sm:$0xff]
    %v263 = vld [vmem:[%s10 + $0x38] sm:$0xff]
    %v264 = vld [vmem:[%s0] sm:$0xff]
    %v265 = vld [vmem:[%s0 + $0x8] sm:$0xff]
    %v266 = vld [vmem:[%s11] sm:$0xff]
    %vm267 = vcmask 64512
    %v269 = vsel %vm267, %v264, 0
    %v272 = vsel %vm267, %v265, 0
    %274 = vmatprep.subr.mxu0 0.0
    %275 = vmatpush1.msra.mxu0 %v266
    %276 = vmatprep.subr.mxu0 0.0
    %277 = vmatpush1.msra.mxu0 0.0
    %278 = vmatprep.subr.mxu0 0.0
    %279 = vmatpush1.msra.mxu0 0.0
    %280 = vmatprep.subr.mxu0 0.0
    %281 = vmatpush1.msra.mxu0 0.0
    %282 = vmatprep.subr.mxu0 0.0
    %283 = vmatpush1.msra.mxu0 0.0
    %284 = vmatprep.subr.mxu0 0.0
    %285 = vmatpush1.msra.mxu0 0.0
    %286 = vmatprep.subr.mxu0 0.0
    %287 = vmatpush1.msra.mxu0 0.0
    %288 = vmatprep.subr.mxu0 0.0
    %289 = vmatpush1.msra.mxu0 0.0
    %290 = vmatprep.subr.mxu0 0.0
    %291 = vmatpush1.msra.mxu0 0.0
    %292 = vmatprep.subr.mxu0 0.0
    %293 = vmatpush1.msra.mxu0 0.0
    %294 = vmatprep.subr.mxu0 0.0
    %295 = vmatpush1.msra.mxu0 0.0
    %296 = vmatprep.subr.mxu0 0.0
    %297 = vmatpush1.msra.mxu0 0.0
    %298 = vmatprep.subr.mxu0 0.0
    %299 = vmatpush1.msra.mxu0 0.0
    %300 = vmatprep.subr.mxu0 0.0
    %301 = vmatpush1.msra.mxu0 0.0
    %302 = vmatprep.subr.mxu0 0.0
    %303 = vmatpush1.msra.mxu0 0.0
    %304 = vmatprep.subr.mxu0 0.0
    %305 = vmatpush1.msra.mxu0 0.0
    %306 = vmatprep.subr.mxu0 0.0
    %307 = vmatpush1.msra.mxu0 0.0
    %308 = vmatprep.subr.mxu0 0.0
    %309 = vmatpush1.msra.mxu0 0.0
    %310 = vmatprep.subr.mxu0 0.0
    %311 = vmatpush1.msra.mxu0 0.0
    %312 = vmatprep.subr.mxu0 0.0
    %313 = vmatpush1.msra.mxu0 0.0
    %314 = vmatprep.subr.mxu0 0.0
    %315 = vmatpush1.msra.mxu0 0.0
    %316 = vmatprep.subr.mxu0 0.0
    %317 = vmatpush1.msra.mxu0 0.0
    %318 = vmatprep.subr.mxu0 0.0
    %319 = vmatpush1.msra.mxu0 0.0
    %320 = vmatprep.subr.mxu0 0.0
    %321 = vmatpush1.msra.mxu0 0.0
    %322 = vmatprep.subr.mxu0 0.0
    %323 = vmatpush1.msra.mxu0 0.0
    %324 = vmatprep.subr.mxu0 0.0
    %325 = vmatpush1.msra.mxu0 0.0
    %326 = vmatprep.subr.mxu0 0.0
    %327 = vmatpush1.msra.mxu0 0.0
    %328 = vmatprep.subr.mxu0 0.0
    %329 = vmatpush1.msra.mxu0 0.0
    %330 = vmatprep.subr.mxu0 0.0
    %331 = vmatpush1.msra.mxu0 0.0
    %332 = vmatprep.subr.mxu0 0.0
    %333 = vmatpush1.msra.mxu0 0.0
    %334 = vmatprep.subr.mxu0 0.0
    %335 = vmatpush1.msra.mxu0 0.0
    %336 = vmatprep.subr.mxu0 0.0
    %337 = vmatpush1.msra.mxu0 0.0
    %338 = vmatprep.mubr.f32.mxu0 0.0
    %339 = vmatmul.mubr.f32.gmra.mrb[0].mxu0 %v269
    %v340 = vpop.f32.mrb[0].mxu0
    %v341 = vadd.f32 0.0, %v340
    %v342 = vpop.f32.mrb[0].mxu0
    %343 = vmatprep.mubr.f32.mxu0 0.0
    %344 = vmatmul.mubr.f32.gmra.mrb[0].mxu0 %v272
    %v345 = vpop.f32.mrb[0].mxu0
    %v346 = vadd.f32 0.0, %v345
    %v347 = vpop.f32.mrb[0].mxu0
    %348 = vdwg.mxu0
    %vm349 = vcmask 523264
    %v351 = vsel %vm349, %v248, 0
    %v354 = vsel %vm349, %v253, 0
    %356 = vmatprep.subr.mxu0 0.0
    %357 = vmatpush1.msra.mxu0 %v256
    %358 = vmatprep.subr.mxu0 0.0
    %359 = vmatpush1.msra.mxu0 %v257
    %360 = vmatprep.subr.mxu0 0.0
    %361 = vmatpush1.msra.mxu0 %v258
    %362 = vmatprep.subr.mxu0 0.0
    %363 = vmatpush1.msra.mxu0 %v259
    %364 = vmatprep.subr.mxu0 0.0
    %365 = vmatpush1.msra.mxu0 %v260
    %366 = vmatprep.subr.mxu0 0.0
    %367 = vmatpush1.msra.mxu0 %v261
    %368 = vmatprep.subr.mxu0 0.0
    %369 = vmatpush1.msra.mxu0 %v262
    %370 = vmatprep.subr.mxu0 0.0
    %371 = vmatpush1.msra.mxu0 %v263
    %372 = vmatprep.subr.mxu0 0.0
    %373 = vmatpush1.msra.mxu0 0.0
    %374 = vmatprep.subr.mxu0 0.0
    %375 = vmatpush1.msra.mxu0 0.0
    %376 = vmatprep.subr.mxu0 0.0
    %377 = vmatpush1.msra.mxu0 0.0
    %378 = vmatprep.subr.mxu0 0.0
    %379 = vmatpush1.msra.mxu0 0.0
    %380 = vmatprep.subr.mxu0 0.0
    %381 = vmatpush1.msra.mxu0 0.0
    %382 = vmatprep.subr.mxu0 0.0
    %383 = vmatpush1.msra.mxu0 0.0
    %384 = vmatprep.subr.mxu0 0.0
    %385 = vmatpush1.msra.mxu0 0.0
    %386 = vmatprep.subr.mxu0 0.0
    %387 = vmatpush1.msra.mxu0 0.0
    %388 = vmatprep.subr.mxu0 0.0
    %389 = vmatpush1.msra.mxu0 0.0
    %390 = vmatprep.subr.mxu0 0.0
    %391 = vmatpush1.msra.mxu0 0.0
    %392 = vmatprep.subr.mxu0 0.0
    %393 = vmatpush1.msra.mxu0 0.0
    %394 = vmatprep.subr.mxu0 0.0
    %395 = vmatpush1.msra.mxu0 0.0
    %396 = vmatprep.subr.mxu0 0.0
    %397 = vmatpush1.msra.mxu0 0.0
    %398 = vmatprep.subr.mxu0 0.0
    %399 = vmatpush1.msra.mxu0 0.0
    %400 = vmatprep.subr.mxu0 0.0
    %401 = vmatpush1.msra.mxu0 0.0
    %402 = vmatprep.subr.mxu0 0.0
    %403 = vmatpush1.msra.mxu0 0.0
    %404 = vmatprep.subr.mxu0 0.0
    %405 = vmatpush1.msra.mxu0 0.0
    %406 = vmatprep.subr.mxu0 0.0
    %407 = vmatpush1.msra.mxu0 0.0
    %408 = vmatprep.subr.mxu0 0.0
    %409 = vmatpush1.msra.mxu0 0.0
    %410 = vmatprep.subr.mxu0 0.0
    %411 = vmatpush1.msra.mxu0 0.0
    %412 = vmatprep.subr.mxu0 0.0
    %413 = vmatpush1.msra.mxu0 0.0
    %414 = vmatprep.subr.mxu0 0.0
    %415 = vmatpush1.msra.mxu0 0.0
    %416 = vmatprep.subr.mxu0 0.0
    %417 = vmatpush1.msra.mxu0 0.0
    %418 = vmatprep.subr.mxu0 0.0
    %419 = vmatpush1.msra.mxu0 0.0
    %420 = vmatprep.mubr.f32.mxu0 0.0
    %421 = vmatmul.mubr.f32.gmra.mrb[0].mxu0 %v351
    %v422 = vpop.f32.mrb[0].mxu0
    %v423 = vadd.f32 %v341, %v422
    %v424 = vpop.f32.mrb[0].mxu0
    %425 = vmatprep.mubr.f32.mxu0 0.0
    %426 = vmatmul.mubr.f32.gmra.mrb[0].mxu0 %v354
    %v427 = vpop.f32.mrb[0].mxu0
    %v428 = vadd.f32 %v346, %v427
    %v429 = vpop.f32.mrb[0].mxu0
    %430 = vdwg.mxu0
    %v431 = vld [vmem:[%s12] sm:$0x1]
    %v433 = vlaneseq
    %v434 = vshrl.u32 %v433, 7
    %v435 = vsub.s32 0, %v434
    %v436 = vrot.slane %v431, %v435
    %v438 = vadd.f32 %v423, %v436
    %v439 = vadd.f32 %v428, %v436
    %v440 = vmax.f32 %v438, 0.0
    %v441 = vmax.f32 %v439, 0.0
    %v442 = vld [vmem:[%s3] sm:$0xff]
    %v443 = vld [vmem:[%s3 + $0x8] sm:$0xff]
    %v444 = vld [vmem:[%s3 + $0x10] sm:$0xf]
    %v446 = vsel %vm70, %v442, 0
    %v449 = vsel %vm70, %v443, 0
    %v452 = vsel %vm70, %v444, 0
    %454 = vmatprep.subr.mxu0 0.0
    %455 = vmatpush1.msra.mxu0 %v440
    %456 = vmatprep.subr.mxu0 0.0
    %457 = vmatpush1.msra.mxu0 %v441
    %458 = vmatprep.subr.mxu0 0.0
    %459 = vmatpush1.msra.mxu0 0.0
    %460 = vmatprep.subr.mxu0 0.0
    %461 = vmatpush1.msra.mxu0 0.0
    %462 = vmatprep.subr.mxu0 0.0
    %463 = vmatpush1.msra.mxu0 0.0
    %464 = vmatprep.subr.mxu0 0.0
    %465 = vmatpush1.msra.mxu0 0.0
    %466 = vmatprep.subr.mxu0 0.0
    %467 = vmatpush1.msra.mxu0 0.0
    %468 = vmatprep.subr.mxu0 0.0
    %469 = vmatpush1.msra.mxu0 0.0
    %470 = vmatprep.subr.mxu0 0.0
    %471 = vmatpush1.msra.mxu0 0.0
    %472 = vmatprep.subr.mxu0 0.0
    %473 = vmatpush1.msra.mxu0 0.0
    %474 = vmatprep.subr.mxu0 0.0
    %475 = vmatpush1.msra.mxu0 0.0
    %476 = vmatprep.subr.mxu0 0.0
    %477 = vmatpush1.msra.mxu0 0.0
    %478 = vmatprep.subr.mxu0 0.0
    %479 = vmatpush1.msra.mxu0 0.0
    %480 = vmatprep.subr.mxu0 0.0
    %481 = vmatpush1.msra.mxu0 0.0
    %482 = vmatprep.subr.mxu0 0.0
    %483 = vmatpush1.msra.mxu0 0.0
    %484 = vmatprep.subr.mxu0 0.0
    %485 = vmatpush1.msra.mxu0 0.0
    %486 = vmatprep.subr.mxu0 0.0
    %487 = vmatpush1.msra.mxu0 0.0
    %488 = vmatprep.subr.mxu0 0.0
    %489 = vmatpush1.msra.mxu0 0.0
    %490 = vmatprep.subr.mxu0 0.0
    %491 = vmatpush1.msra.mxu0 0.0
    %492 = vmatprep.subr.mxu0 0.0
    %493 = vmatpush1.msra.mxu0 0.0
    %494 = vmatprep.subr.mxu0 0.0
    %495 = vmatpush1.msra.mxu0 0.0
    %496 = vmatprep.subr.mxu0 0.0
    %497 = vmatpush1.msra.mxu0 0.0
    %498 = vmatprep.subr.mxu0 0.0
    %499 = vmatpush1.msra.mxu0 0.0
    %500 = vmatprep.subr.mxu0 0.0
    %501 = vmatpush1.msra.mxu0 0.0
    %502 = vmatprep.subr.mxu0 0.0
    %503 = vmatpush1.msra.mxu0 0.0
    %504 = vmatprep.subr.mxu0 0.0
    %505 = vmatpush1.msra.mxu0 0.0
    %506 = vmatprep.subr.mxu0 0.0
    %507 = vmatpush1.msra.mxu0 0.0
    %508 = vmatprep.subr.mxu0 0.0
    %509 = vmatpush1.msra.mxu0 0.0
    %510 = vmatprep.subr.mxu0 0.0
    %511 = vmatpush1.msra.mxu0 0.0
    %512 = vmatprep.subr.mxu0 0.0
    %513 = vmatpush1.msra.mxu0 0.0
    %514 = vmatprep.subr.mxu0 0.0
    %515 = vmatpush1.msra.mxu0 0.0
    %516 = vmatprep.subr.mxu0 0.0
    %517 = vmatpush1.msra.mxu0 0.0
    %518 = vmatprep.mubr.f32.mxu0 0.0
    %519 = vmatmul.mubr.f32.gmra.mrb[0].mxu0 %v446
    %v520 = vpop.f32.mrb[0].mxu0
    %v521 = vadd.f32 0.0, %v520
    %v522 = vpop.f32.mrb[0].mxu0
    %523 = vmatprep.mubr.f32.mxu0 0.0
    %524 = vmatmul.mubr.f32.gmra.mrb[0].mxu0 %v449
    %v525 = vpop.f32.mrb[0].mxu0
    %v526 = vadd.f32 0.0, %v525
    %v527 = vpop.f32.mrb[0].mxu0
    %528 = vmatprep.mubr.f32.mxu0 0.0
    %529 = vmatmul.mubr.f32.gmra.mrb[0].mxu0 %v452
    %v530 = vpop.f32.mrb[0].mxu0
    %v531 = vadd.f32 0.0, %v530
    %v532 = vpop.f32.mrb[0].mxu0
    %533 = vdwg.mxu0
    %v534 = vld [vmem:[%s15] sm:$0xff]
    %v535 = vld [vmem:[%s15 + $0x8] sm:$0xff]
    %v536 = vld [vmem:[%s15 + $0x10] sm:$0xf]
    %v537 = vmul.f32 %v521, %v534
    %v538 = vmul.f32 %v526, %v535
    %v539 = vmul.f32 %v531, %v536
    %v540 = vld [vmem:[%s13] sm:$0xff]
    %v541 = vld [vmem:[%s13 + $0x8] sm:$0xff]
    %v542 = vld [vmem:[%s13 + $0x10] sm:$0xff]
    %v543 = vld [vmem:[%s13 + $0x18] sm:$0xff]
    %v544 = vld [vmem:[%s13 + $0x20] sm:$0xff]
    %v545 = vld [vmem:[%s13 + $0x28] sm:$0xff]
    %v546 = vld [vmem:[%s13 + $0x30] sm:$0xff]
    %v547 = vld [vmem:[%s13 + $0x38] sm:$0xff]
    %v548 = vld [vmem:[%s14] sm:$0x1]
    %v550 = vlaneseq
    %v551 = vshrl.u32 %v550, 7
    %v552 = vsub.s32 0, %v551
    %v553 = vrot.slane %v548, %v552
    %v556 = vsel %vm349, %v537, 0
    %v559 = vsel %vm349, %v538, 0
    %v562 = vsel %vm349, %v539, 0
    %564 = vmatprep.subr.mxu0 0.0
    %565 = vmatpush1.msra.mxu0 %v540
    %566 = vmatprep.subr.mxu0 0.0
    %567 = vmatpush1.msra.mxu0 %v541
    %568 = vmatprep.subr.mxu0 0.0
    %569 = vmatpush1.msra.mxu0 %v542
    %570 = vmatprep.subr.mxu0 0.0
    %571 = vmatpush1.msra.mxu0 %v543
    %572 = vmatprep.subr.mxu0 0.0
    %573 = vmatpush1.msra.mxu0 %v544
    %574 = vmatprep.subr.mxu0 0.0
    %575 = vmatpush1.msra.mxu0 %v545
    %576 = vmatprep.subr.mxu0 0.0
    %577 = vmatpush1.msra.mxu0 %v546
    %578 = vmatprep.subr.mxu0 0.0
    %579 = vmatpush1.msra.mxu0 %v547
    %580 = vmatprep.subr.mxu0 0.0
    %581 = vmatpush1.msra.mxu0 0.0
    %582 = vmatprep.subr.mxu0 0.0
    %583 = vmatpush1.msra.mxu0 0.0
    %584 = vmatprep.subr.mxu0 0.0
    %585 = vmatpush1.msra.mxu0 0.0
    %586 = vmatprep.subr.mxu0 0.0
    %587 = vmatpush1.msra.mxu0 0.0
    %588 = vmatprep.subr.mxu0 0.0
    %589 = vmatpush1.msra.mxu0 0.0
    %590 = vmatprep.subr.mxu0 0.0
    %591 = vmatpush1.msra.mxu0 0.0
    %592 = vmatprep.subr.mxu0 0.0
    %593 = vmatpush1.msra.mxu0 0.0
    %594 = vmatprep.subr.mxu0 0.0
    %595 = vmatpush1.msra.mxu0 0.0
    %596 = vmatprep.subr.mxu0 0.0
    %597 = vmatpush1.msra.mxu0 0.0
    %598 = vmatprep.subr.mxu0 0.0
    %599 = vmatpush1.msra.mxu0 0.0
    %600 = vmatprep.subr.mxu0 0.0
    %601 = vmatpush1.msra.mxu0 0.0
    %602 = vmatprep.subr.mxu0 0.0
    %603 = vmatpush1.msra.mxu0 0.0
    %604 = vmatprep.subr.mxu0 0.0
    %605 = vmatpush1.msra.mxu0 0.0
    %606 = vmatprep.subr.mxu0 0.0
    %607 = vmatpush1.msra.mxu0 0.0
    %608 = vmatprep.subr.mxu0 0.0
    %609 = vmatpush1.msra.mxu0 0.0
    %610 = vmatprep.subr.mxu0 0.0
    %611 = vmatpush1.msra.mxu0 0.0
    %612 = vmatprep.subr.mxu0 0.0
    %613 = vmatpush1.msra.mxu0 0.0
    %614 = vmatprep.subr.mxu0 0.0
    %615 = vmatpush1.msra.mxu0 0.0
    %616 = vmatprep.subr.mxu0 0.0
    %617 = vmatpush1.msra.mxu0 0.0
    %618 = vmatprep.subr.mxu0 0.0
    %619 = vmatpush1.msra.mxu0 0.0
    %620 = vmatprep.subr.mxu0 0.0
    %621 = vmatpush1.msra.mxu0 0.0
    %622 = vmatprep.subr.mxu0 0.0
    %623 = vmatpush1.msra.mxu0 0.0
    %624 = vmatprep.subr.mxu0 0.0
    %625 = vmatpush1.msra.mxu0 0.0
    %626 = vmatprep.subr.mxu0 0.0
    %627 = vmatpush1.msra.mxu0 0.0
    %628 = vmatprep.mubr.f32.mxu0 0.0
    %629 = vmatmul.mubr.f32.gmra.mrb[0].mxu0 %v556
    %v630 = vpop.f32.mrb[0].mxu0
    %v631 = vadd.f32 %v553, %v630
    %v632 = vpop.f32.mrb[0].mxu0
    %633 = vmatprep.mubr.f32.mxu0 0.0
    %634 = vmatmul.mubr.f32.gmra.mrb[0].mxu0 %v559
    %v635 = vpop.f32.mrb[0].mxu0
    %v636 = vadd.f32 %v553, %v635
    %v637 = vpop.f32.mrb[0].mxu0
    %638 = vmatprep.mubr.f32.mxu0 0.0
    %639 = vmatmul.mubr.f32.gmra.mrb[0].mxu0 %v562
    %v640 = vpop.f32.mrb[0].mxu0
    %v641 = vadd.f32 %v553, %v640
    %v642 = vpop.f32.mrb[0].mxu0
    %643 = vdwg.mxu0
    %v644 = vld [vmem:[%s5] sm:$0x3]
    %v645 = vld [vmem:[%s6] sm:$0xff]
    %vm646 = vcmask 162816
    %v648 = vsel %vm646, %v644, 0
    %vm650 = vcmask 1043456
    %v652 = vsel %vm650, %v641, 0
    %654 = vmatprep.subr.mxu0 0.0
    %655 = vmatpush1.msra.mxu0 %v631
    %656 = vmatprep.subr.mxu0 0.0
    %657 = vmatpush1.msra.mxu0 %v636
    %658 = vmatprep.subr.mxu0 0.0
    %659 = vmatpush1.msra.mxu0 %v652
    %660 = vmatprep.subr.mxu0 0.0
    %661 = vmatpush1.msra.mxu0 0.0
    %662 = vmatprep.subr.mxu0 0.0
    %663 = vmatpush1.msra.mxu0 0.0
    %664 = vmatprep.subr.mxu0 0.0
    %665 = vmatpush1.msra.mxu0 0.0
    %666 = vmatprep.subr.mxu0 0.0
    %667 = vmatpush1.msra.mxu0 0.0
    %668 = vmatprep.subr.mxu0 0.0
    %669 = vmatpush1.msra.mxu0 0.0
    %670 = vmatprep.subr.mxu0 0.0
    %671 = vmatpush1.msra.mxu0 0.0
    %672 = vmatprep.subr.mxu0 0.0
    %673 = vmatpush1.msra.mxu0 0.0
    %674 = vmatprep.subr.mxu0 0.0
    %675 = vmatpush1.msra.mxu0 0.0
    %676 = vmatprep.subr.mxu0 0.0
    %677 = vmatpush1.msra.mxu0 0.0
    %678 = vmatprep.subr.mxu0 0.0
    %679 = vmatpush1.msra.mxu0 0.0
    %680 = vmatprep.subr.mxu0 0.0
    %681 = vmatpush1.msra.mxu0 0.0
    %682 = vmatprep.subr.mxu0 0.0
    %683 = vmatpush1.msra.mxu0 0.0
    %684 = vmatprep.subr.mxu0 0.0
    %685 = vmatpush1.msra.mxu0 0.0
    %686 = vmatprep.subr.mxu0 0.0
    %687 = vmatpush1.msra.mxu0 0.0
    %688 = vmatprep.subr.mxu0 0.0
    %689 = vmatpush1.msra.mxu0 0.0
    %690 = vmatprep.subr.mxu0 0.0
    %691 = vmatpush1.msra.mxu0 0.0
    %692 = vmatprep.subr.mxu0 0.0
    %693 = vmatpush1.msra.mxu0 0.0
    %694 = vmatprep.subr.mxu0 0.0
    %695 = vmatpush1.msra.mxu0 0.0
    %696 = vmatprep.subr.mxu0 0.0
    %697 = vmatpush1.msra.mxu0 0.0
    %698 = vmatprep.subr.mxu0 0.0
    %699 = vmatpush1.msra.mxu0 0.0
    %700 = vmatprep.subr.mxu0 0.0
    %701 = vmatpush1.msra.mxu0 0.0
    %702 = vmatprep.subr.mxu0 0.0
    %703 = vmatpush1.msra.mxu0 0.0
    %704 = vmatprep.subr.mxu0 0.0
    %705 = vmatpush1.msra.mxu0 0.0
    %706 = vmatprep.subr.mxu0 0.0
    %707 = vmatpush1.msra.mxu0 0.0
    %708 = vmatprep.subr.mxu0 0.0
    %709 = vmatpush1.msra.mxu0 0.0
    %710 = vmatprep.subr.mxu0 0.0
    %711 = vmatpush1.msra.mxu0 0.0
    %712 = vmatprep.subr.mxu0 0.0
    %713 = vmatpush1.msra.mxu0 0.0
    %714 = vmatprep.subr.mxu0 0.0
    %715 = vmatpush1.msra.mxu0 0.0
    %716 = vmatprep.subr.mxu0 0.0
    %717 = vmatpush1.msra.mxu0 0.0
    %718 = vmatprep.mubr.f32.mxu0 0.0
    %719 = vmatmul.mubr.f32.gmra.mrb[0].mxu0 %v648
    %v720 = vpop.f32.mrb[0].mxu0
    %v721 = vadd.f32 0.0, %v720
    %v722 = vpop.f32.mrb[0].mxu0
    %723 = vdwg.mxu0
    %v725 = vsel %vm267, %v721, 0
    %727 = vmatprep.subr.mxu0 0.0
    %728 = vmatpush1.msra.mxu0 %v645
    %729 = vmatprep.subr.mxu0 0.0
    %730 = vmatpush1.msra.mxu0 0.0
    %731 = vmatprep.subr.mxu0 0.0
    %732 = vmatpush1.msra.mxu0 0.0
    %733 = vmatprep.subr.mxu0 0.0
    %734 = vmatpush1.msra.mxu0 0.0
    %735 = vmatprep.subr.mxu0 0.0
    %736 = vmatpush1.msra.mxu0 0.0
    %737 = vmatprep.subr.mxu0 0.0
    %738 = vmatpush1.msra.mxu0 0.0
    %739 = vmatprep.subr.mxu0 0.0
    %740 = vmatpush1.msra.mxu0 0.0
    %741 = vmatprep.subr.mxu0 0.0
    %742 = vmatpush1.msra.mxu0 0.0
    %743 = vmatprep.subr.mxu0 0.0
    %744 = vmatpush1.msra.mxu0 0.0
    %745 = vmatprep.subr.mxu0 0.0
    %746 = vmatpush1.msra.mxu0 0.0
    %747 = vmatprep.subr.mxu0 0.0
    %748 = vmatpush1.msra.mxu0 0.0
    %749 = vmatprep.subr.mxu0 0.0
    %750 = vmatpush1.msra.mxu0 0.0
    %751 = vmatprep.subr.mxu0 0.0
    %752 = vmatpush1.msra.mxu0 0.0
    %753 = vmatprep.subr.mxu0 0.0
    %754 = vmatpush1.msra.mxu0 0.0
    %755 = vmatprep.subr.mxu0 0.0
    %756 = vmatpush1.msra.mxu0 0.0
    %757 = vmatprep.subr.mxu0 0.0
    %758 = vmatpush1.msra.mxu0 0.0
    %759 = vmatprep.subr.mxu0 0.0
    %760 = vmatpush1.msra.mxu0 0.0
    %761 = vmatprep.subr.mxu0 0.0
    %762 = vmatpush1.msra.mxu0 0.0
    %763 = vmatprep.subr.mxu0 0.0
    %764 = vmatpush1.msra.mxu0 0.0
    %765 = vmatprep.subr.mxu0 0.0
    %766 = vmatpush1.msra.mxu0 0.0
    %767 = vmatprep.subr.mxu0 0.0
    %768 = vmatpush1.msra.mxu0 0.0
    %769 = vmatprep.subr.mxu0 0.0
    %770 = vmatpush1.msra.mxu0 0.0
    %771 = vmatprep.subr.mxu0 0.0
    %772 = vmatpush1.msra.mxu0 0.0
    %773 = vmatprep.subr.mxu0 0.0
    %774 = vmatpush1.msra.mxu0 0.0
    %775 = vmatprep.subr.mxu0 0.0
    %776 = vmatpush1.msra.mxu0 0.0
    %777 = vmatprep.subr.mxu0 0.0
    %778 = vmatpush1.msra.mxu0 0.0
    %779 = vmatprep.subr.mxu0 0.0
    %780 = vmatpush1.msra.mxu0 0.0
    %781 = vmatprep.subr.mxu0 0.0
    %782 = vmatpush1.msra.mxu0 0.0
    %783 = vmatprep.subr.mxu0 0.0
    %784 = vmatpush1.msra.mxu0 0.0
    %785 = vmatprep.subr.mxu0 0.0
    %786 = vmatpush1.msra.mxu0 0.0
    %787 = vmatprep.subr.mxu0 0.0
    %788 = vmatpush1.msra.mxu0 0.0
    %789 = vmatprep.subr.mxu0 0.0
    %790 = vmatpush1.msra.mxu0 0.0
    %791 = vmatprep.mubr.f32.mxu0 0.0
    %792 = vmatmul.mubr.f32.gmra.mrb[0].mxu0 %v725
    %v793 = vpop.f32.mrb[0].mxu0
    %v794 = vadd.f32 0.0, %v793
    %v795 = vpop.f32.mrb[0].mxu0
    %796 = vdwg.mxu0
    %v797 = vmul.f32 %v794, 0.05
    %v798 = vld [vmem:[%s4] sm:$0xff]
    %v799 = vld [vmem:[%s4 + $0x8] sm:$0xff]
    %v800 = vld [vmem:[%s4 + $0x10] sm:$0xf]
    %vm801 = vcmask 15360
    %v803 = vsel %vm801, %v798, 0
    %v806 = vsel %vm801, %v799, 0
    %v809 = vsel %vm801, %v800, 0
    %vm811 = vcmask 1041408
    %v813 = vsel %vm811, %v797, 0
    %815 = vmatprep.subr.mxu0 0.0
    %816 = vmatpush1.msra.mxu0 %v813
    %817 = vmatprep.subr.mxu0 0.0
    %818 = vmatpush1.msra.mxu0 0.0
    %819 = vmatprep.subr.mxu0 0.0
    %820 = vmatpush1.msra.mxu0 0.0
    %821 = vmatprep.subr.mxu0 0.0
    %822 = vmatpush1.msra.mxu0 0.0
    %823 = vmatprep.subr.mxu0 0.0
    %824 = vmatpush1.msra.mxu0 0.0
    %825 = vmatprep.subr.mxu0 0.0
    %826 = vmatpush1.msra.mxu0 0.0
    %827 = vmatprep.subr.mxu0 0.0
    %828 = vmatpush1.msra.mxu0 0.0
    %829 = vmatprep.subr.mxu0 0.0
    %830 = vmatpush1.msra.mxu0 0.0
    %831 = vmatprep.subr.mxu0 0.0
    %832 = vmatpush1.msra.mxu0 0.0
    %833 = vmatprep.subr.mxu0 0.0
    %834 = vmatpush1.msra.mxu0 0.0
    %835 = vmatprep.subr.mxu0 0.0
    %836 = vmatpush1.msra.mxu0 0.0
    %837 = vmatprep.subr.mxu0 0.0
    %838 = vmatpush1.msra.mxu0 0.0
    %839 = vmatprep.subr.mxu0 0.0
    %840 = vmatpush1.msra.mxu0 0.0
    %841 = vmatprep.subr.mxu0 0.0
    %842 = vmatpush1.msra.mxu0 0.0
    %843 = vmatprep.subr.mxu0 0.0
    %844 = vmatpush1.msra.mxu0 0.0
    %845 = vmatprep.subr.mxu0 0.0
    %846 = vmatpush1.msra.mxu0 0.0
    %847 = vmatprep.subr.mxu0 0.0
    %848 = vmatpush1.msra.mxu0 0.0
    %849 = vmatprep.subr.mxu0 0.0
    %850 = vmatpush1.msra.mxu0 0.0
    %851 = vmatprep.subr.mxu0 0.0
    %852 = vmatpush1.msra.mxu0 0.0
    %853 = vmatprep.subr.mxu0 0.0
    %854 = vmatpush1.msra.mxu0 0.0
    %855 = vmatprep.subr.mxu0 0.0
    %856 = vmatpush1.msra.mxu0 0.0
    %857 = vmatprep.subr.mxu0 0.0
    %858 = vmatpush1.msra.mxu0 0.0
    %859 = vmatprep.subr.mxu0 0.0
    %860 = vmatpush1.msra.mxu0 0.0
    %861 = vmatprep.subr.mxu0 0.0
    %862 = vmatpush1.msra.mxu0 0.0
    %863 = vmatprep.subr.mxu0 0.0
    %864 = vmatpush1.msra.mxu0 0.0
    %865 = vmatprep.subr.mxu0 0.0
    %866 = vmatpush1.msra.mxu0 0.0
    %867 = vmatprep.subr.mxu0 0.0
    %868 = vmatpush1.msra.mxu0 0.0
    %869 = vmatprep.subr.mxu0 0.0
    %870 = vmatpush1.msra.mxu0 0.0
    %871 = vmatprep.subr.mxu0 0.0
    %872 = vmatpush1.msra.mxu0 0.0
    %873 = vmatprep.subr.mxu0 0.0
    %874 = vmatpush1.msra.mxu0 0.0
    %875 = vmatprep.subr.mxu0 0.0
    %876 = vmatpush1.msra.mxu0 0.0
    %877 = vmatprep.subr.mxu0 0.0
    %878 = vmatpush1.msra.mxu0 0.0
    %879 = vmatprep.mubr.f32.mxu0 0.0
    %880 = vmatmul.mubr.f32.gmra.mrb[0].mxu0 %v803
    %v881 = vpop.f32.mrb[0].mxu0
    %v882 = vadd.f32 0.0, %v881
    %v883 = vpop.f32.mrb[0].mxu0
    %884 = vmatprep.mubr.f32.mxu0 0.0
    %885 = vmatmul.mubr.f32.gmra.mrb[0].mxu0 %v806
    %v886 = vpop.f32.mrb[0].mxu0
    %v887 = vadd.f32 0.0, %v886
    %v888 = vpop.f32.mrb[0].mxu0
    %889 = vmatprep.mubr.f32.mxu0 0.0
    %890 = vmatmul.mubr.f32.gmra.mrb[0].mxu0 %v809
    %v891 = vpop.f32.mrb[0].mxu0
    %v892 = vadd.f32 0.0, %v891
    %v893 = vpop.f32.mrb[0].mxu0
    %894 = vdwg.mxu0
    %v895 = vld [vmem:[%s7] sm:$0xf]
    %vm896 = vcmask 31744
    %v898 = vsel %vm896, %v882, 0
    %v901 = vsel %vm896, %v887, 0
    %v904 = vsel %vm896, %v892, 0
    %v907 = vsel %vm650, %v895, 0
    %909 = vmatprep.subr.mxu0 0.0
    %910 = vmatpush1.msra.mxu0 %v907
    %911 = vmatprep.subr.mxu0 0.0
    %912 = vmatpush1.msra.mxu0 0.0
    %913 = vmatprep.subr.mxu0 0.0
    %914 = vmatpush1.msra.mxu0 0.0
    %915 = vmatprep.subr.mxu0 0.0
    %916 = vmatpush1.msra.mxu0 0.0
    %917 = vmatprep.subr.mxu0 0.0
    %918 = vmatpush1.msra.mxu0 0.0
    %919 = vmatprep.subr.mxu0 0.0
    %920 = vmatpush1.msra.mxu0 0.0
    %921 = vmatprep.subr.mxu0 0.0
    %922 = vmatpush1.msra.mxu0 0.0
    %923 = vmatprep.subr.mxu0 0.0
    %924 = vmatpush1.msra.mxu0 0.0
    %925 = vmatprep.subr.mxu0 0.0
    %926 = vmatpush1.msra.mxu0 0.0
    %927 = vmatprep.subr.mxu0 0.0
    %928 = vmatpush1.msra.mxu0 0.0
    %929 = vmatprep.subr.mxu0 0.0
    %930 = vmatpush1.msra.mxu0 0.0
    %931 = vmatprep.subr.mxu0 0.0
    %932 = vmatpush1.msra.mxu0 0.0
    %933 = vmatprep.subr.mxu0 0.0
    %934 = vmatpush1.msra.mxu0 0.0
    %935 = vmatprep.subr.mxu0 0.0
    %936 = vmatpush1.msra.mxu0 0.0
    %937 = vmatprep.subr.mxu0 0.0
    %938 = vmatpush1.msra.mxu0 0.0
    %939 = vmatprep.subr.mxu0 0.0
    %940 = vmatpush1.msra.mxu0 0.0
    %941 = vmatprep.subr.mxu0 0.0
    %942 = vmatpush1.msra.mxu0 0.0
    %943 = vmatprep.subr.mxu0 0.0
    %944 = vmatpush1.msra.mxu0 0.0
    %945 = vmatprep.subr.mxu0 0.0
    %946 = vmatpush1.msra.mxu0 0.0
    %947 = vmatprep.subr.mxu0 0.0
    %948 = vmatpush1.msra.mxu0 0.0
    %949 = vmatprep.subr.mxu0 0.0
    %950 = vmatpush1.msra.mxu0 0.0
    %951 = vmatprep.subr.mxu0 0.0
    %952 = vmatpush1.msra.mxu0 0.0
    %953 = vmatprep.subr.mxu0 0.0
    %954 = vmatpush1.msra.mxu0 0.0
    %955 = vmatprep.subr.mxu0 0.0
    %956 = vmatpush1.msra.mxu0 0.0
    %957 = vmatprep.subr.mxu0 0.0
    %958 = vmatpush1.msra.mxu0 0.0
    %959 = vmatprep.subr.mxu0 0.0
    %960 = vmatpush1.msra.mxu0 0.0
    %961 = vmatprep.subr.mxu0 0.0
    %962 = vmatpush1.msra.mxu0 0.0
    %963 = vmatprep.subr.mxu0 0.0
    %964 = vmatpush1.msra.mxu0 0.0
    %965 = vmatprep.subr.mxu0 0.0
    %966 = vmatpush1.msra.mxu0 0.0
    %967 = vmatprep.subr.mxu0 0.0
    %968 = vmatpush1.msra.mxu0 0.0
    %969 = vmatprep.subr.mxu0 0.0
    %970 = vmatpush1.msra.mxu0 0.0
    %971 = vmatprep.subr.mxu0 0.0
    %972 = vmatpush1.msra.mxu0 0.0
    %973 = vmatprep.mubr.f32.mxu0 0.0
    %974 = vmatmul.mubr.f32.gmra.mrb[0].mxu0 %v898
    %v975 = vpop.f32.mrb[0].mxu0
    %v976 = vadd.f32 0.0, %v975
    %v977 = vpop.f32.mrb[0].mxu0
    %978 = vmatprep.mubr.f32.mxu0 0.0
    %979 = vmatmul.mubr.f32.gmra.mrb[0].mxu0 %v901
    %v980 = vpop.f32.mrb[0].mxu0
    %v981 = vadd.f32 0.0, %v980
    %v982 = vpop.f32.mrb[0].mxu0
    %983 = vmatprep.mubr.f32.mxu0 0.0
    %984 = vmatmul.mubr.f32.gmra.mrb[0].mxu0 %v904
    %v985 = vpop.f32.mrb[0].mxu0
    %v986 = vadd.f32 0.0, %v985
    %v987 = vpop.f32.mrb[0].mxu0
    %988 = vdwg.mxu0
    %v989 = vsub.f32 %v631, %v976
    %v990 = vsub.f32 %v636, %v981
    %v991 = vsub.f32 %v641, %v986
    %v992 = vmul.f32 %v989, %v989
    %v993 = vmul.f32 %v990, %v990
    %v994 = vmul.f32 %v991, %v991
    %v996 = vsel %vm650, %v994, 0
    %998 = vmatprep.subr.mxu0 0.0
    %999 = vmatpush1.msra.mxu0 %v992
    %1000 = vmatprep.subr.mxu0 0.0
    %1001 = vmatpush1.msra.mxu0 %v993
    %1002 = vmatprep.subr.mxu0 0.0
    %1003 = vmatpush1.msra.mxu0 %v996
    %1004 = vmatprep.subr.mxu0 0.0
    %1005 = vmatpush1.msra.mxu0 0.0
    %1006 = vmatprep.subr.mxu0 0.0
    %1007 = vmatpush1.msra.mxu0 0.0
    %1008 = vmatprep.subr.mxu0 0.0
    %1009 = vmatpush1.msra.mxu0 0.0
    %1010 = vmatprep.subr.mxu0 0.0
    %1011 = vmatpush1.msra.mxu0 0.0
    %1012 = vmatprep.subr.mxu0 0.0
    %1013 = vmatpush1.msra.mxu0 0.0
    %1014 = vmatprep.subr.mxu0 0.0
    %1015 = vmatpush1.msra.mxu0 0.0
    %1016 = vmatprep.subr.mxu0 0.0
    %1017 = vmatpush1.msra.mxu0 0.0
    %1018 = vmatprep.subr.mxu0 0.0
    %1019 = vmatpush1.msra.mxu0 0.0
    %1020 = vmatprep.subr.mxu0 0.0
    %1021 = vmatpush1.msra.mxu0 0.0
    %1022 = vmatprep.subr.mxu0 0.0
    %1023 = vmatpush1.msra.mxu0 0.0
    %1024 = vmatprep.subr.mxu0 0.0
    %1025 = vmatpush1.msra.mxu0 0.0
    %1026 = vmatprep.subr.mxu0 0.0
    %1027 = vmatpush1.msra.mxu0 0.0
    %1028 = vmatprep.subr.mxu0 0.0
    %1029 = vmatpush1.msra.mxu0 0.0
    %1030 = vmatprep.subr.mxu0 0.0
    %1031 = vmatpush1.msra.mxu0 0.0
    %1032 = vmatprep.subr.mxu0 0.0
    %1033 = vmatpush1.msra.mxu0 0.0
    %1034 = vmatprep.subr.mxu0 0.0
    %1035 = vmatpush1.msra.mxu0 0.0
    %1036 = vmatprep.subr.mxu0 0.0
    %1037 = vmatpush1.msra.mxu0 0.0
    %1038 = vmatprep.subr.mxu0 0.0
    %1039 = vmatpush1.msra.mxu0 0.0
    %1040 = vmatprep.subr.mxu0 0.0
    %1041 = vmatpush1.msra.mxu0 0.0
    %1042 = vmatprep.subr.mxu0 0.0
    %1043 = vmatpush1.msra.mxu0 0.0
    %1044 = vmatprep.subr.mxu0 0.0
    %1045 = vmatpush1.msra.mxu0 0.0
    %1046 = vmatprep.subr.mxu0 0.0
    %1047 = vmatpush1.msra.mxu0 0.0
    %1048 = vmatprep.subr.mxu0 0.0
    %1049 = vmatpush1.msra.mxu0 0.0
    %1050 = vmatprep.subr.mxu0 0.0
    %1051 = vmatpush1.msra.mxu0 0.0
    %1052 = vmatprep.subr.mxu0 0.0
    %1053 = vmatpush1.msra.mxu0 0.0
    %1054 = vmatprep.subr.mxu0 0.0
    %1055 = vmatpush1.msra.mxu0 0.0
    %1056 = vmatprep.subr.mxu0 0.0
    %1057 = vmatpush1.msra.mxu0 0.0
    %1058 = vmatprep.subr.mxu0 0.0
    %1059 = vmatpush1.msra.mxu0 0.0
    %1060 = vmatprep.subr.mxu0 0.0
    %1061 = vmatpush1.msra.mxu0 0.0
    %1062 = vmatprep.mubr.f32.mxu0 0.0
    %1063 = vmatmul.mubr.f32.gmra.mrb[0].mxu0 %v648
    %v1064 = vpop.f32.mrb[0].mxu0
    %v1065 = vadd.f32 0.0, %v1064
    %v1066 = vpop.f32.mrb[0].mxu0
    %1067 = vdwg.mxu0
    %v1069 = vsel %vm267, %v1065, 0
    %1071 = vmatprep.subr.mxu0 0.0
    %1072 = vmatpush1.msra.mxu0 %v645
    %1073 = vmatprep.subr.mxu0 0.0
    %1074 = vmatpush1.msra.mxu0 0.0
    %1075 = vmatprep.subr.mxu0 0.0
    %1076 = vmatpush1.msra.mxu0 0.0
    %1077 = vmatprep.subr.mxu0 0.0
    %1078 = vmatpush1.msra.mxu0 0.0
    %1079 = vmatprep.subr.mxu0 0.0
    %1080 = vmatpush1.msra.mxu0 0.0
    %1081 = vmatprep.subr.mxu0 0.0
    %1082 = vmatpush1.msra.mxu0 0.0
    %1083 = vmatprep.subr.mxu0 0.0
    %1084 = vmatpush1.msra.mxu0 0.0
    %1085 = vmatprep.subr.mxu0 0.0
    %1086 = vmatpush1.msra.mxu0 0.0
    %1087 = vmatprep.subr.mxu0 0.0
    %1088 = vmatpush1.msra.mxu0 0.0
    %1089 = vmatprep.subr.mxu0 0.0
    %1090 = vmatpush1.msra.mxu0 0.0
    %1091 = vmatprep.subr.mxu0 0.0
    %1092 = vmatpush1.msra.mxu0 0.0
    %1093 = vmatprep.subr.mxu0 0.0
    %1094 = vmatpush1.msra.mxu0 0.0
    %1095 = vmatprep.subr.mxu0 0.0
    %1096 = vmatpush1.msra.mxu0 0.0
    %1097 = vmatprep.subr.mxu0 0.0
    %1098 = vmatpush1.msra.mxu0 0.0
    %1099 = vmatprep.subr.mxu0 0.0
    %1100 = vmatpush1.msra.mxu0 0.0
    %1101 = vmatprep.subr.mxu0 0.0
    %1102 = vmatpush1.msra.mxu0 0.0
    %1103 = vmatprep.subr.mxu0 0.0
    %1104 = vmatpush1.msra.mxu0 0.0
    %1105 = vmatprep.subr.mxu0 0.0
    %1106 = vmatpush1.msra.mxu0 0.0
    %1107 = vmatprep.subr.mxu0 0.0
    %1108 = vmatpush1.msra.mxu0 0.0
    %1109 = vmatprep.subr.mxu0 0.0
    %1110 = vmatpush1.msra.mxu0 0.0
    %1111 = vmatprep.subr.mxu0 0.0
    %1112 = vmatpush1.msra.mxu0 0.0
    %1113 = vmatprep.subr.mxu0 0.0
    %1114 = vmatpush1.msra.mxu0 0.0
    %1115 = vmatprep.subr.mxu0 0.0
    %1116 = vmatpush1.msra.mxu0 0.0
    %1117 = vmatprep.subr.mxu0 0.0
    %1118 = vmatpush1.msra.mxu0 0.0
    %1119 = vmatprep.subr.mxu0 0.0
    %1120 = vmatpush1.msra.mxu0 0.0
    %1121 = vmatprep.subr.mxu0 0.0
    %1122 = vmatpush1.msra.mxu0 0.0
    %1123 = vmatprep.subr.mxu0 0.0
    %1124 = vmatpush1.msra.mxu0 0.0
    %1125 = vmatprep.subr.mxu0 0.0
    %1126 = vmatpush1.msra.mxu0 0.0
    %1127 = vmatprep.subr.mxu0 0.0
    %1128 = vmatpush1.msra.mxu0 0.0
    %1129 = vmatprep.subr.mxu0 0.0
    %1130 = vmatpush1.msra.mxu0 0.0
    %1131 = vmatprep.subr.mxu0 0.0
    %1132 = vmatpush1.msra.mxu0 0.0
    %1133 = vmatprep.subr.mxu0 0.0
    %1134 = vmatpush1.msra.mxu0 0.0
    %1135 = vmatprep.mubr.f32.mxu0 0.0
    %1136 = vmatmul.mubr.f32.gmra.mrb[0].mxu0 %v1069
    %v1137 = vpop.f32.mrb[0].mxu0
    %v1138 = vadd.f32 0.0, %v1137
    %v1139 = vpop.f32.mrb[0].mxu0
    %1140 = vdwg.mxu0
    %vm1141 = vcmask 25600
    %1142 = vst.msk [vmem:[#allocation2] sm:$0x3] %vm1141, %v797
    %v1143 = vmul.f32 %v1138, 0.05263158
    %v1144 = vrsqrt.pop %v1143
    %v1145 = vmul.f32 %v1143, %v1144
    %vm1146 = vcmp.eq.f32.partialorder %v1143, inf
    %v1147 = vsel %vm1146, %v1143, %v1145
    %vm1148 = vcmp.eq.f32.partialorder %v1143, 0.0
    %v1149 = vand.u32 %v1143, 2147483648
    %v1150 = vsel %vm1148, %v1149, %v1147
    %1151 = vst.msk [vmem:[#allocation4] sm:$0x3] %vm1141, %v1150
    // Predicated region
    $region66: #{tpu_custom_call.1} parent=1 // pred_check
      _
    $region67: #{tpu_custom_call.1} parent=1 // pred_check_branch
      %1153 = sbr.rel (0) target = $region69
    $region68: #{tpu_custom_call.1} parent=1 // pred_region
      %s1155 = ssub.s32 32, 32
      %1156 = vsyncadd [#allocation3], %s1155
      %s1158 = sshll.u32 [#allocation2], 4
      %s1159 = int_to_ptr.vmem [resolvable:$true] %s1158
      %1161 = dma.vmem_to_hbm [thread:$0]  %s1159, 32, %s16, [#allocation3]
    $region69: #{tpu_custom_call.1} parent=1 // pred_fallthru
      _
    // Predicated region
    $region70: #{tpu_custom_call.1} parent=1 // pred_check
      _
    $region71: #{tpu_custom_call.1} parent=1 // pred_check_branch
      %1163 = sbr.rel (0) target = $region73
    $region72: #{tpu_custom_call.1} parent=1 // pred_region
      %s1165 = ssub.s32 32, 32
      %1166 = vsyncadd [#allocation5], %s1165
      %s1168 = sshll.u32 [#allocation4], 4
      %s1169 = int_to_ptr.vmem [resolvable:$true] %s1168
      %1171 = dma.vmem_to_hbm [thread:$0]  %s1169, 32, %s17, [#allocation5]
    $region73: #{tpu_custom_call.1} parent=1 // pred_fallthru
      _
    // Predicated region
    $region74: #{tpu_custom_call.1} parent=1 // pred_check
      _
    $region75: #{tpu_custom_call.1} parent=1 // pred_check_branch
      %1173 = sbr.rel (0) target = $region77
    $region76: #{tpu_custom_call.1} parent=1 // pred_region
      %1174 = dma.done [#allocation3], 32
    $region77: #{tpu_custom_call.1} parent=1 // pred_fallthru
      _
    // Predicated region
    $region78: #{tpu_custom_call.1} parent=1 // pred_check
      _
    $region79: #{tpu_custom_call.1} parent=1 // pred_check_branch
      %1176 = sbr.rel (0) target = $region81
    $region80: #{tpu_custom_call.1} parent=1 // pred_region
      %1177 = dma.done [#allocation5], 32
    $region81: #{tpu_custom_call.1} parent=1 // pred_fallthru
      _
    %1178 = vsyncpa [#allocation3], 1
    %1179 = vsyncpa [#allocation5], 1

</llo_original>
